<compile_context>
chip_gen: v5e
topology: v5e:2x2
jax: 0.10.0
libtpu: 0.0.40
codegen_flags: <defaults>
</compile_context>

<pallas_src>
import math
import jax
import jax.numpy as jnp
from jax.experimental import pallas as pl
from jax.experimental.pallas import tpu as pltpu


# ----------------------------------------------------------------------------
# Fused PALayer kernel
# ----------------------------------------------------------------------------
def _pa_kernel(x_ref, w1_ref, b1_ref, w2_ref, b2_ref, o_ref):
    """One (batch-fold, hw-tile) block of PALayer.

    x_ref / o_ref : (Nb, C, T) f32   (NCHW with H*W flattened onto lanes)
    w1_ref        : (C8, C)    f32   first 1x1 conv weight
    b1_ref        : (C8, 1)    f32
    w2_ref        : (C8, 1)    f32   second 1x1 conv weight (Cout = 1)
    b2_ref        : (1,)       f32   (SMEM scalar)
    """
    w1 = w1_ref[...]            # (C8, C)
    b1 = b1_ref[...]            # (C8, 1)
    w2 = w2_ref[...]            # (C8, 1)
    b2 = b2_ref[0]              # scalar

    nb = x_ref.shape[0]
    for b in range(nb):                                            # Nb is tiny (<=4), static unroll
        x_b = x_ref[b]                                             # (C, T) f32
        # conv1x1 #1 on the MXU (f32 multi-pass, full precision).
        h = jnp.dot(w1, x_b, preferred_element_type=jnp.float32)   # (C8, T)
        h = jnp.maximum(h + b1, 0.0)                               # bias + ReLU fused
        # conv1x1 #2: Cout = 1 -> VPU multiply + sublane reduce (no Cout padding).
        logit = jnp.sum(h * w2, axis=0, keepdims=True)             # (1, T)
        a = jax.nn.sigmoid(logit + b2)                             # (1, T)
        # Gate: broadcast attention map over channels, single store.
        o_ref[b] = x_b * a


def pa_layer(x, w1, b1, w2, b2):
    """PALayer forward.

    x  : (N, C, H, W) f32
    w1 : (C//8, C, 1, 1) f32   b1 : (C//8,) f32
    w2 : (1, C//8, 1, 1) f32   b2 : (1,)    f32
    """
    N, C, H, W = x.shape
    C8 = w1.shape[0]
    HW = H * W
    LANE = 128

    # ---- lane tile: fixed target (~2 MiB of x per image slab), pad HW to it ----
    hw_128 = -(-HW // LANE) * LANE                       # HW rounded up to 128
    t_target = ((2 << 20) // (C * 4)) // LANE * LANE     # ~2 MiB per image slab
    t_target = max(LANE, min(8192, t_target))
    T = min(t_target, hw_128)
    HW_p = -(-HW // T) * T                               # HW padded to multiple of T
    n_t = HW_p // T

    # ---- batch folding: ~<=4 MiB per x block, keep >=2 grid steps (v7x 2 TCs) ----
    per_image = C * T * 4
    Nb = 1
    for d in range(1, N + 1):
        if N % d == 0 and d * per_image <= (4 << 20):
            Nb = d
    while Nb > 1 and (N // Nb) * n_t < 2:
        Nb -= 1
        while Nb > 1 and N % Nb != 0:
            Nb -= 1
    grid = (N // Nb, n_t)

    x3 = x.reshape(N, C, HW)
    if HW_p != HW:
        # Zero padding is safe: padded columns give out = 0 * sigmoid(..) and
        # are sliced away below.
        x3 = jnp.pad(x3, ((0, 0), (0, 0), (0, HW_p - HW)))

    w1m = w1.reshape(C8, C).astype(jnp.float32)
    b1m = b1.reshape(C8, 1).astype(jnp.float32)
    w2m = w2.reshape(C8, 1).astype(jnp.float32)
    b2m = b2.reshape(1).astype(jnp.float32)

    out = pl.pallas_call(
        _pa_kernel,
        out_shape=jax.ShapeDtypeStruct((N, C, HW_p), jnp.float32),
        grid_spec=pltpu.PrefetchScalarGridSpec(
            num_scalar_prefetch=0,
            grid=grid,
            in_specs=[
                pl.BlockSpec((Nb, C, T), lambda n, t: (n, 0, t)),   # x
                pl.BlockSpec((C8, C), lambda n, t: (0, 0)),         # w1
                pl.BlockSpec((C8, 1), lambda n, t: (0, 0)),         # b1
                pl.BlockSpec((C8, 1), lambda n, t: (0, 0)),         # w2
                pl.BlockSpec(memory_space=pltpu.MemorySpace.SMEM),  # b2 scalar
            ],
            out_specs=pl.BlockSpec((Nb, C, T), lambda n, t: (n, 0, t)),
        ),
        compiler_params=pltpu.CompilerParams(
            dimension_semantics=("parallel", "parallel"),
            vmem_limit_bytes=48 << 20),
    )(x3, w1m, b1m, w2m, b2m)

    if HW_p != HW:
        out = out[:, :, :HW]
    return out.reshape(N, C, H, W)

# TODO(synk): if the surrounding model runs activations in bf16, switch x/out
# to bf16 I/O (keep f32 matmul accumulation) for ~2x on this HBM-bound kernel.


# ----------------------------------------------------------------------------
# Pure-JAX f32 reference
# ----------------------------------------------------------------------------
def pa_reference(x, w1, b1, w2, b2):
    C8 = w1.shape[0]
    h = jnp.einsum("oc,nchw->nohw", w1.reshape(C8, -1), x,
                   precision=jax.lax.Precision.HIGHEST)
    h = jnp.maximum(h + b1[None, :, None, None], 0.0)
    logit = jnp.einsum("ko,nohw->nkhw", w2.reshape(1, C8), h,
                       precision=jax.lax.Precision.HIGHEST) + b2[None, :, None, None]
    return x * jax.nn.sigmoid(logit)


def _make_params(key, C):
    kw1, kb1, kw2, kb2 = jax.random.split(key, 4)
    C8 = C // 8
    # PyTorch Conv2d default init: U(-1/sqrt(fan_in), 1/sqrt(fan_in)), fan_in = Cin*k*k
    bound1 = 1.0 / math.sqrt(C)
    w1 = jax.random.uniform(kw1, (C8, C, 1, 1), jnp.float32, -bound1, bound1)
    b1 = jax.random.uniform(kb1, (C8,), jnp.float32, -bound1, bound1)
    bound2 = 1.0 / math.sqrt(C8)
    w2 = jax.random.uniform(kw2, (1, C8, 1, 1), jnp.float32, -bound2, bound2)
    b2 = jax.random.uniform(kb2, (1,), jnp.float32, -bound2, bound2)
    return w1, b1, w2, b2


# ----------------------------------------------------------------------------
if __name__ == "__main__":
    key = jax.random.PRNGKey(0)
    k1, k2, kp1, kp2 = jax.random.split(key, 4)
    fn = jax.jit(pa_layer)

    # Case 1: typical PALayer shape (HW is a multiple of 128, batch folding path).
    N, C, H, W = 2, 256, 16, 16
    x = jax.random.normal(k1, (N, C, H, W), dtype=jnp.float32)
    w1, b1, w2, b2 = _make_params(kp1, C)
    out = jax.block_until_ready(fn(x, w1, b1, w2, b2))
    assert out.shape == (N, C, H, W), out.shape
    assert bool(jnp.all(jnp.isfinite(out)))
    ref = pa_reference(x, w1, b1, w2, b2)
    err = float(jnp.max(jnp.abs(out - ref)))
    assert bool(jnp.allclose(out, ref, rtol=1e-4, atol=1e-4)), err

    # Case 2: odd spatial size (exercises the zero-padding / slice-back path).
    N, C, H, W = 3, 64, 13, 17
    x = jax.random.normal(k2, (N, C, H, W), dtype=jnp.float32)
    w1, b1, w2, b2 = _make_params(kp2, C)
    out = jax.block_until_ready(fn(x, w1, b1, w2, b2))
    assert out.shape == (N, C, H, W), out.shape
    assert bool(jnp.all(jnp.isfinite(out)))
    ref = pa_reference(x, w1, b1, w2, b2)
    err = float(jnp.max(jnp.abs(out - ref)))
    assert bool(jnp.allclose(out, ref, rtol=1e-4, atol=1e-4)), err

    print("KERNEL_OK")
</pallas_src>

<mosaic_0001>
module attributes {stable_mosaic.version = 11 : i64} {
  func.func @_pa_kernel(%arg0: i32, %arg1: i32, %arg2: memref<1x256x256xf32, #tpu.memory_space<vmem>>, %arg3: memref<32x256xf32, #tpu.memory_space<vmem>>, %arg4: memref<32x1xf32, #tpu.memory_space<vmem>>, %arg5: memref<32x1xf32, #tpu.memory_space<vmem>>, %arg6: memref<1xf32, #tpu.memory_space<smem>>, %arg7: memref<1x256x256xf32, #tpu.memory_space<vmem>>) attributes {dimension_semantics = [#tpu.dimension_semantics<parallel>, #tpu.dimension_semantics<parallel>], iteration_bounds = array<i64: 2, 1>, scalar_prefetch = 0 : i64, scratch_operands = 0 : i64, tpu.core_type = #tpu.core_type<tc>, window_params = [{transform_indices = @transform_0, window_bounds = array<i64: 1, 256, 256>}, {pipeline_mode = #tpu.pipeline_mode<synchronous>, transform_indices = @transform_1, window_bounds = array<i64: 32, 256>}, {pipeline_mode = #tpu.pipeline_mode<synchronous>, transform_indices = @transform_2, window_bounds = array<i64: 32, 1>}, {pipeline_mode = #tpu.pipeline_mode<synchronous>, transform_indices = @transform_3, window_bounds = array<i64: 32, 1>}, {transform_indices = @transform_4, window_bounds = array<i64: 1>}, {transform_indices = @transform_5, window_bounds = array<i64: 1, 256, 256>}]} {
    %c0 = arith.constant 0 : index
    %c0_0 = arith.constant 0 : index
    %0 = vector.load %arg3[%c0, %c0_0] : memref<32x256xf32, #tpu.memory_space<vmem>>, vector<32x256xf32>
    %c0_1 = arith.constant 0 : index
    %c0_2 = arith.constant 0 : index
    %1 = vector.load %arg4[%c0_1, %c0_2] : memref<32x1xf32, #tpu.memory_space<vmem>>, vector<32x1xf32>
    %c0_3 = arith.constant 0 : index
    %c0_4 = arith.constant 0 : index
    %2 = vector.load %arg5[%c0_3, %c0_4] : memref<32x1xf32, #tpu.memory_space<vmem>>, vector<32x1xf32>
    %c0_5 = arith.constant 0 : index
    %3 = memref.load %arg6[%c0_5] : memref<1xf32, #tpu.memory_space<smem>>
    %c0_6 = arith.constant 0 : index
    %c0_7 = arith.constant 0 : index
    %c0_8 = arith.constant 0 : index
    %4 = vector.load %arg2[%c0_6, %c0_7, %c0_8] : memref<1x256x256xf32, #tpu.memory_space<vmem>>, vector<1x256x256xf32>
    %5 = vector.shape_cast %4 : vector<1x256x256xf32> to vector<256x256xf32>
    %cst = arith.constant dense<0.000000e+00> : vector<32x256xf32>
    %6 = tpu.matmul %0, %5, %cst {dimension_numbers = #tpu.dot_dimension_numbers<[1], [0], [0], [1], [0, 0, 1, 1], [], []>} : vector<32x256xf32>, vector<256x256xf32>, vector<32x256xf32> -> vector<32x256xf32>
    %7 = vector.broadcast %1 : vector<32x1xf32> to vector<32x256xf32>
    %8 = arith.addf %6, %7 : vector<32x256xf32>
    %cst_9 = arith.constant 0.000000e+00 : f32
    %9 = vector.broadcast %cst_9 : f32 to vector<32x256xf32>
    %10 = arith.maximumf %8, %9 : vector<32x256xf32>
    %11 = vector.broadcast %2 : vector<32x1xf32> to vector<32x256xf32>
    %12 = arith.mulf %10, %11 : vector<32x256xf32>
    %cst_10 = arith.constant dense<0.000000e+00> : vector<256xf32>
    %13 = vector.multi_reduction <add>, %12, %cst_10 [0] : vector<32x256xf32> to vector<256xf32>
    %14 = vector.shape_cast %13 : vector<256xf32> to vector<1x256xf32>
    %15 = vector.broadcast %3 : f32 to vector<1x256xf32>
    %16 = arith.addf %14, %15 : vector<1x256xf32>
    %17 = arith.negf %16 : vector<1x256xf32>
    %18 = math.exp %17 : vector<1x256xf32>
    %cst_11 = arith.constant 1.000000e+00 : f32
    %19 = vector.broadcast %cst_11 : f32 to vector<1x256xf32>
    %20 = arith.addf %19, %18 : vector<1x256xf32>
    %21 = arith.divf %19, %20 : vector<1x256xf32>
    %22 = vector.broadcast %21 : vector<1x256xf32> to vector<256x256xf32>
    %23 = arith.mulf %5, %22 : vector<256x256xf32>
    %c0_12 = arith.constant 0 : index
    %c0_13 = arith.constant 0 : index
    %c0_14 = arith.constant 0 : index
    %24 = vector.load %arg7[%c0_12, %c0_13, %c0_14] : memref<1x256x256xf32, #tpu.memory_space<vmem>>, vector<1x256x256xf32>
    %25 = vector.shape_cast %24 : vector<1x256x256xf32> to vector<256x256xf32>
    %26 = vector.shape_cast %23 : vector<256x256xf32> to vector<1x256x256xf32>
    tpu.vector_store %arg7[%c0_12, %c0_13, %c0_14], %26 {strides = array<i32>} : memref<1x256x256xf32, #tpu.memory_space<vmem>>, vector<1x256x256xf32>,
    return
  }
  func.func @transform_0(%arg0: i32, %arg1: i32) -> (i32, i32, i32) {
    %c0_i32 = arith.constant 0 : i32
    %c0_i32_0 = arith.constant 0 : i32
    return %arg0, %c0_i32, %arg1 : i32, i32, i32
  }
  func.func @transform_1(%arg0: i32, %arg1: i32) -> (i32, i32) {
    %c0_i32 = arith.constant 0 : i32
    %c0_i32_0 = arith.constant 0 : i32
    %c0_i32_1 = arith.constant 0 : i32
    return %c0_i32, %c0_i32_0 : i32, i32
  }
  func.func @transform_2(%arg0: i32, %arg1: i32) -> (i32, i32) {
    %c0_i32 = arith.constant 0 : i32
    %c0_i32_0 = arith.constant 0 : i32
    %c0_i32_1 = arith.constant 0 : i32
    return %c0_i32, %c0_i32_0 : i32, i32
  }
  func.func @transform_3(%arg0: i32, %arg1: i32) -> (i32, i32) {
    %c0_i32 = arith.constant 0 : i32
    %c0_i32_0 = arith.constant 0 : i32
    %c0_i32_1 = arith.constant 0 : i32
    return %c0_i32, %c0_i32_0 : i32, i32
  }
  func.func @transform_4(%arg0: i32, %arg1: i32) -> i32 {
    %c0_i32 = arith.constant 0 : i32
    %c0_i32_0 = arith.constant 0 : i32
    return %c0_i32 : i32
  }
  func.func @transform_5(%arg0: i32, %arg1: i32) -> (i32, i32, i32) {
    %c0_i32 = arith.constant 0 : i32
    %c0_i32_0 = arith.constant 0 : i32
    return %arg0, %c0_i32, %arg1 : i32, i32, i32
  }
}

</mosaic_0001>

<llo_original>
// kernel: pa_layer.1
$region0: #{pa_layer.1}
  #allocation0 [shape = 'u32[]', space=smem, size = 0x4, offset = 0x4, fixed_abs, tag = 'smem constant byte address 0x4 - core index']
  #allocation1 [shape = 'u32[72,128]{1,0:T(1,128)}', space=vmem, size = 0x9000, scoped, tag = 'internal scratch']
  #allocation2 [shape = 'f32[1]{0:T(128)S(6)}', space=smem, size = 0x200, scoped, tag = 'scoped memory for pa_layer.1']
  %s0 = inlined_call_operand.vmem [shape: f32[2,256,256], index: 0, kind: input, shape index: {}]
  %s1 = inlined_call_operand.vmem [shape: f32[32,256], index: 1, kind: input, shape index: {}]
  %s2 = inlined_call_operand.vmem [shape: f32[32,1], index: 2, kind: input, shape index: {}]
  %s3 = inlined_call_operand.vmem [shape: f32[32,1], index: 3, kind: input, shape index: {}]
  %s4 = inlined_call_operand.<no memory space> [shape: f32[1], index: 4, kind: input, shape index: {}]
  %s5 = inlined_call_operand.vmem [shape: f32[2,256,256], index: 5, kind: output, shape index: {}]
  %s6 = sld [smem:[#allocation0]]
  $region53: #{pa_layer.1} parent=0
    _
  %s8 = ssub.s32 1, %s6
  %s9 = scalar_select 0, %s8, %s6
  %10 = sst [smem:[#allocation2]] %s4
  loop: start=0, step=1, limit=4
  $region2: #{pa_layer.1} parent=0 // loop_pre_header
    _
  $region3: #{pa_layer.1} parent=0 // loop_header
    %s12 = sphi 0, %s16
    %p13 = scmp.ge.s32.totalorder %s12, 4
    %s19 = sphi 0, %s31
    %s20 = sphi 0, %s27
    %s21 = sphi 0, %s19
    %s22 = sphi 0, %s20
    %s23 = sphi 0, %s21
    %s24 = sphi 0, %s22
    %s36 = sphi 0, %s38
    %s39 = sphi 0, %s36
    %s40 = sphi 0, %s39
    %s56 = sphi 0, %s40
    %s60 = sphi 0, %s60
    %s62 = sphi 0, %s60
    %s63 = sphi 0, %s62
    %s77 = sphi 0, %s63
    %s81 = sphi 0, %s81
    %s83 = sphi 0, %s81
    %s84 = sphi 0, %s83
    %s98 = sphi 0, %s84
    %s102 = sphi 0, %s102
    %s104 = sphi 0, %s102
    %s105 = sphi 0, %s104
    %s119 = sphi 0, %s105
    %s123 = sphi 0, %s123
    %s125 = sphi 0, %s123
    %s126 = sphi 0, %s125
    %s140 = sphi 0, %s126
    %s148 = sphi 0, %s150
    %s151 = sphi 0, %s148
    %s152 = sphi 0, %s151
    %s168 = sphi 0, %s152
  $region4: #{pa_layer.1} parent=0 // loop_header_branch
    %15 = sbr.rel (%p13) target = $region8
  $region5: #{pa_layer.1} parent=0 // loop_body
    %s17 = ssub.s32 %s12, 1
    %s18 = ssub.s32 %s12, 2
    %s25 = sadd.s32 1, %s20
    %p26 = scmp.ge.s32.totalorder %s25, 1
    %s27 = scalar_select %p26, 0, %s25
    %s28 = sadd.s32 1, %s19
    %s29 = scalar_select %p26, %s28, %s19
    %p30 = scmp.ge.s32.totalorder %s29, 2
    %s31 = scalar_select %p30, 0, %s29
    %s32 = ssub.s32 %s19, %s31
    %s33 = ssub.s32 %s20, %s27
    %s34 = sor.u32 %s32, %s33
    %p35 = scmp.eq.s32.totalorder %s34, 0
    %s37 = sadd.s32 %s36, 1
    %s38 = scalar_select %p35, %s36, %s37
    %p41 = pneg %p35
    %p42 = scmp.eq.s32.totalorder %s12, 1
    %p43 = por %p41, %p42
    %p44 = scmp.ne.s32.totalorder %s36, %s39
    %p45 = scmp.eq.s32.totalorder %s12, 0
    %p46 = por %p44, %p45
    %p47 = scmp.ne.s32.totalorder %s36, %s39
    %p48 = scmp.eq.s32.totalorder %s17, 1
    %p49 = por %p47, %p48
    %p50 = scmp.ne.s32.totalorder %s39, %s40
    %p51 = scmp.eq.s32.totalorder %s17, 0
    %p52 = por %p50, %p51
    %p53 = scmp.ne.s32.totalorder %s39, %s40
    %p54 = scmp.eq.s32.totalorder %s18, 1
    %p55 = por %p53, %p54
    %p57 = scmp.ne.s32.totalorder %s40, %s56
    %p58 = scmp.eq.s32.totalorder %s18, 0
    %p59 = por %p57, %p58
    %s61 = sadd.s32 %s60, 1
    %p64 = scmp.eq.s32.totalorder %s12, 1
    %p65 = scmp.ne.s32.totalorder %s60, %s62
    %p66 = scmp.eq.s32.totalorder %s12, 0
    %p67 = por %p65, %p66
    %p68 = scmp.ne.s32.totalorder %s60, %s62
    %p69 = scmp.eq.s32.totalorder %s17, 1
    %p70 = por %p68, %p69
    %p71 = scmp.ne.s32.totalorder %s62, %s63
    %p72 = scmp.eq.s32.totalorder %s17, 0
    %p73 = por %p71, %p72
    %p74 = scmp.ne.s32.totalorder %s62, %s63
    %p75 = scmp.eq.s32.totalorder %s18, 1
    %p76 = por %p74, %p75
    %p78 = scmp.ne.s32.totalorder %s63, %s77
    %p79 = scmp.eq.s32.totalorder %s18, 0
    %p80 = por %p78, %p79
    %s82 = sadd.s32 %s81, 1
    %p85 = scmp.eq.s32.totalorder %s12, 1
    %p86 = scmp.ne.s32.totalorder %s81, %s83
    %p87 = scmp.eq.s32.totalorder %s12, 0
    %p88 = por %p86, %p87
    %p89 = scmp.ne.s32.totalorder %s81, %s83
    %p90 = scmp.eq.s32.totalorder %s17, 1
    %p91 = por %p89, %p90
    %p92 = scmp.ne.s32.totalorder %s83, %s84
    %p93 = scmp.eq.s32.totalorder %s17, 0
    %p94 = por %p92, %p93
    %p95 = scmp.ne.s32.totalorder %s83, %s84
    %p96 = scmp.eq.s32.totalorder %s18, 1
    %p97 = por %p95, %p96
    %p99 = scmp.ne.s32.totalorder %s84, %s98
    %p100 = scmp.eq.s32.totalorder %s18, 0
    %p101 = por %p99, %p100
    %s103 = sadd.s32 %s102, 1
    %p106 = scmp.eq.s32.totalorder %s12, 1
    %p107 = scmp.ne.s32.totalorder %s102, %s104
    %p108 = scmp.eq.s32.totalorder %s12, 0
    %p109 = por %p107, %p108
    %p110 = scmp.ne.s32.totalorder %s102, %s104
    %p111 = scmp.eq.s32.totalorder %s17, 1
    %p112 = por %p110, %p111
    %p113 = scmp.ne.s32.totalorder %s104, %s105
    %p114 = scmp.eq.s32.totalorder %s17, 0
    %p115 = por %p113, %p114
    %p116 = scmp.ne.s32.totalorder %s104, %s105
    %p117 = scmp.eq.s32.totalorder %s18, 1
    %p118 = por %p116, %p117
    %p120 = scmp.ne.s32.totalorder %s105, %s119
    %p121 = scmp.eq.s32.totalorder %s18, 0
    %p122 = por %p120, %p121
    %s124 = sadd.s32 %s123, 1
    %p127 = scmp.eq.s32.totalorder %s12, 1
    %p128 = scmp.ne.s32.totalorder %s123, %s125
    %p129 = scmp.eq.s32.totalorder %s12, 0
    %p130 = por %p128, %p129
    %p131 = scmp.ne.s32.totalorder %s123, %s125
    %p132 = scmp.eq.s32.totalorder %s17, 1
    %p133 = por %p131, %p132
    %p134 = scmp.ne.s32.totalorder %s125, %s126
    %p135 = scmp.eq.s32.totalorder %s17, 0
    %p136 = por %p134, %p135
    %p137 = scmp.ne.s32.totalorder %s125, %s126
    %p138 = scmp.eq.s32.totalorder %s18, 1
    %p139 = por %p137, %p138
    %p141 = scmp.ne.s32.totalorder %s126, %s140
    %p142 = scmp.eq.s32.totalorder %s18, 0
    %p143 = por %p141, %p142
    %s144 = ssub.s32 %s19, %s31
    %s145 = ssub.s32 %s20, %s27
    %s146 = sor.u32 %s144, %s145
    %p147 = scmp.eq.s32.totalorder %s146, 0
    %s149 = sadd.s32 %s148, 1
    %s150 = scalar_select %p147, %s148, %s149
    %p153 = pneg %p147
    %p154 = scmp.eq.s32.totalorder %s12, 1
    %p155 = por %p153, %p154
    %p156 = scmp.ne.s32.totalorder %s148, %s151
    %p157 = scmp.eq.s32.totalorder %s12, 0
    %p158 = por %p156, %p157
    %p159 = scmp.ne.s32.totalorder %s148, %s151
    %p160 = scmp.eq.s32.totalorder %s17, 1
    %p161 = por %p159, %p160
    %p162 = scmp.ne.s32.totalorder %s151, %s152
    %p163 = scmp.eq.s32.totalorder %s17, 0
    %p164 = por %p162, %p163
    %p165 = scmp.ne.s32.totalorder %s151, %s152
    %p166 = scmp.eq.s32.totalorder %s18, 1
    %p167 = por %p165, %p166
    %p169 = scmp.ne.s32.totalorder %s152, %s168
    %p170 = scmp.eq.s32.totalorder %s18, 0
    %p171 = por %p169, %p170
    %p172 = scmp.le.s32.totalorder 1, %s12
    %p173 = scmp.lt.s32.totalorder %s12, 3
    %p174 = pnand %p172, %p173
    %p175 = pneg %p174
    // Predicated region
    $region9: #{pa_layer.1} parent=5 // pred_check
      _
    $region10: #{pa_layer.1} parent=5 // pred_check_branch
      %177 = sbr.rel (%p174) target = $region12
    $region11: #{pa_layer.1} parent=5 // pred_region
      %s178 = ssub.s32 %s12, 1
      // Predicated region
      $region13: #{pa_layer.1} parent=11 // pred_check
        %p179 = pneg %p73
      $region14: #{pa_layer.1} parent=11 // pred_check_branch
        %181 = sbr.rel (%p179) target = $region16
      $region15: #{pa_layer.1} parent=11 // pred_region
        _
      $region16: #{pa_layer.1} parent=11 // pred_fallthru
        _
      // Predicated region
      $region17: #{pa_layer.1} parent=11 // pred_check
        %p182 = pneg %p94
      $region18: #{pa_layer.1} parent=11 // pred_check_branch
        %184 = sbr.rel (%p182) target = $region20
      $region19: #{pa_layer.1} parent=11 // pred_region
        _
      $region20: #{pa_layer.1} parent=11 // pred_fallthru
        _
      // Predicated region
      $region21: #{pa_layer.1} parent=11 // pred_check
        %p185 = pneg %p115
      $region22: #{pa_layer.1} parent=11 // pred_check_branch
        %187 = sbr.rel (%p185) target = $region24
      $region23: #{pa_layer.1} parent=11 // pred_region
        _
      $region24: #{pa_layer.1} parent=11 // pred_fallthru
        _
      // Predicated region
      $region25: #{pa_layer.1} parent=11 // pred_check
        %p188 = pneg %p136
      $region26: #{pa_layer.1} parent=11 // pred_check_branch
        %190 = sbr.rel (%p188) target = $region28
      $region27: #{pa_layer.1} parent=11 // pred_region
        _
      $region28: #{pa_layer.1} parent=11 // pred_fallthru
        _
    $region12: #{pa_layer.1} parent=5 // pred_fallthru
      _
    %p191 = scmp.lt.s32.totalorder %s12, 2
    // Predicated region
    $region29: #{pa_layer.1} parent=5 // pred_check
      %p192 = pneg %p191
    $region30: #{pa_layer.1} parent=5 // pred_check_branch
      %194 = sbr.rel (%p192) target = $region32
    $region31: #{pa_layer.1} parent=5 // pred_region
      // Predicated region
      $region33: #{pa_layer.1} parent=31 // pred_check
        %p195 = pneg %p46
      $region34: #{pa_layer.1} parent=31 // pred_check_branch
        %197 = sbr.rel (%p195) target = $region36
      $region35: #{pa_layer.1} parent=31 // pred_region
        %s198 = smul.u32 2, %s20
        %p199 = scmp.lt.s32.totalorder %s19, 1
        %s200 = scalar_select %p199, %s19, 1
        %p201 = scmp.lt.s32.totalorder %s198, 1
        %s202 = scalar_select %p201, %s198, 1
        %s203 = smul.addr %s200, 64
        %s204 = sadd.s32 %s202, %s203
        %s205 = smul.addr %s204, 8
        %s206 = scalar_lea.vmem %s0, %s205
        %s207 = smul.u32 2, %s20
      $region36: #{pa_layer.1} parent=31 // pred_fallthru
        _
    $region32: #{pa_layer.1} parent=5 // pred_fallthru
      _
    %p208 = scmp.le.s32.totalorder 1, %s12
    %p209 = scmp.lt.s32.totalorder %s12, 3
    %p210 = pnand %p208, %p209
    %p211 = pneg %p210
    // Predicated region
    $region37: #{pa_layer.1} parent=5 // pred_check
      _
    $region38: #{pa_layer.1} parent=5 // pred_check_branch
      %213 = sbr.rel (%p210) target = $region40
    $region39: #{pa_layer.1} parent=5 // pred_region
      %s214 = ssub.s32 %s12, 1
      %s215 = smul.u32 2, %s22
      %p216 = scmp.lt.s32.totalorder %s21, 1
      %s217 = scalar_select %p216, %s21, 1
      %p218 = scmp.lt.s32.totalorder %s215, 1
      %s219 = scalar_select %p218, %s215, 1
      %s220 = smul.addr %s217, 64
      %s221 = sadd.s32 %s219, %s220
      %s222 = smul.addr %s221, 8
      %s223 = scalar_lea.vmem %s0, %s222
      %p224 = pneg %p52
      %p225 = pneg %p49
      %p226 = pneg %p73
      %p227 = pneg %p70
      %p228 = pneg %p94
      %p229 = pneg %p91
      %p230 = pneg %p115
      %p231 = pneg %p112
      %p232 = pneg %p136
      %p233 = pneg %p133
      %p234 = pneg %p164
      %p235 = pneg %p161
      %s236 = smul.u32 2, %s22
      %p237 = scmp.lt.s32.totalorder %s21, 1
      %s238 = scalar_select %p237, %s21, 1
      %p239 = scmp.lt.s32.totalorder %s236, 1
      %s240 = scalar_select %p239, %s236, 1
      %s241 = smul.addr %s238, 64
      %s242 = sadd.s32 %s240, %s241
      %s243 = smul.addr %s242, 8
      %s244 = scalar_lea.vmem %s5, %s243
      %s245 = smul.u32 2, %s22
      %p246 = scmp.lt.s32.totalorder %s21, 1
      %s247 = scalar_select %p246, %s21, 1
      %p248 = scmp.lt.s32.totalorder %s245, 1
      %s249 = scalar_select %p248, %s245, 1
      %s250 = smul.addr %s247, 64
      %s251 = sadd.s32 %s249, %s250
      %s252 = smul.addr %s251, 8
      %s253 = scalar_lea.vmem %s0, %s252
      %s254 = smul.u32 2, %s22
      %s255 = smul.u32 2, %s22
      %p256 = scmp.lt.s32.totalorder %s21, 1
      %s257 = scalar_select %p256, %s21, 1
      %p258 = scmp.lt.s32.totalorder %s255, 1
      %s259 = scalar_select %p258, %s255, 1
      %s260 = smul.addr %s257, 64
      %s261 = sadd.s32 %s259, %s260
      %s262 = smul.addr %s261, 8
      %s263 = scalar_lea.vmem %s5, %s262
      %s264 = smul.u32 2, %s22
      %v265 = vld [vmem:[%s1] sm:$0xff]
      %v266 = vld [vmem:[%s1 + $0x8] sm:$0xff]
      %v267 = vld [vmem:[%s1 + $0x10] sm:$0xff]
      %v268 = vld [vmem:[%s1 + $0x18] sm:$0xff]
      %v269 = vld [vmem:[%s1 + $0x20] sm:$0xff]
      %v270 = vld [vmem:[%s1 + $0x28] sm:$0xff]
      %v271 = vld [vmem:[%s1 + $0x30] sm:$0xff]
      %v272 = vld [vmem:[%s1 + $0x38] sm:$0xff]
      %v273 = vld [vmem:[%s2] sm:$0xff]
      %v274 = vld [vmem:[%s2 + $0x8] sm:$0xff]
      %v275 = vld [vmem:[%s2 + $0x10] sm:$0xff]
      %v276 = vld [vmem:[%s2 + $0x18] sm:$0xff]
      %v277 = vld [vmem:[%s3] sm:$0xff]
      %v278 = vld [vmem:[%s3 + $0x8] sm:$0xff]
      %v279 = vld [vmem:[%s3 + $0x10] sm:$0xff]
      %v280 = vld [vmem:[%s3 + $0x18] sm:$0xff]
      %s281 = sld [smem:[#allocation2]]
      %v282 = vld [vmem:[%s253] sm:$0xff]
      %v283 = vld [vmem:[%s253 + $0x8] sm:$0xff]
      %v284 = vld [vmem:[%s253 + $0x10] sm:$0xff]
      %v285 = vld [vmem:[%s253 + $0x18] sm:$0xff]
      %v286 = vld [vmem:[%s253 + $0x20] sm:$0xff]
      %v287 = vld [vmem:[%s253 + $0x28] sm:$0xff]
      %v288 = vld [vmem:[%s253 + $0x30] sm:$0xff]
      %v289 = vld [vmem:[%s253 + $0x38] sm:$0xff]
      %v290 = vld [vmem:[%s253 + $0x40] sm:$0xff]
      %v291 = vld [vmem:[%s253 + $0x48] sm:$0xff]
      %v292 = vld [vmem:[%s253 + $0x50] sm:$0xff]
      %v293 = vld [vmem:[%s253 + $0x58] sm:$0xff]
      %v294 = vld [vmem:[%s253 + $0x60] sm:$0xff]
      %v295 = vld [vmem:[%s253 + $0x68] sm:$0xff]
      %v296 = vld [vmem:[%s253 + $0x70] sm:$0xff]
      %v297 = vld [vmem:[%s253 + $0x78] sm:$0xff]
      %v298 = vld [vmem:[%s253 + $0x80] sm:$0xff]
      %v299 = vld [vmem:[%s253 + $0x88] sm:$0xff]
      %v300 = vld [vmem:[%s253 + $0x90] sm:$0xff]
      %v301 = vld [vmem:[%s253 + $0x98] sm:$0xff]
      %v302 = vld [vmem:[%s253 + $0xa0] sm:$0xff]
      %v303 = vld [vmem:[%s253 + $0xa8] sm:$0xff]
      %v304 = vld [vmem:[%s253 + $0xb0] sm:$0xff]
      %v305 = vld [vmem:[%s253 + $0xb8] sm:$0xff]
      %v306 = vld [vmem:[%s253 + $0xc0] sm:$0xff]
      %v307 = vld [vmem:[%s253 + $0xc8] sm:$0xff]
      %v308 = vld [vmem:[%s253 + $0xd0] sm:$0xff]
      %v309 = vld [vmem:[%s253 + $0xd8] sm:$0xff]
      %v310 = vld [vmem:[%s253 + $0xe0] sm:$0xff]
      %v311 = vld [vmem:[%s253 + $0xe8] sm:$0xff]
      %v312 = vld [vmem:[%s253 + $0xf0] sm:$0xff]
      %v313 = vld [vmem:[%s253 + $0xf8] sm:$0xff]
      %v314 = vld [vmem:[%s253 + $0x100] sm:$0xff]
      %v315 = vld [vmem:[%s253 + $0x108] sm:$0xff]
      %v316 = vld [vmem:[%s253 + $0x110] sm:$0xff]
      %v317 = vld [vmem:[%s253 + $0x118] sm:$0xff]
      %v318 = vld [vmem:[%s253 + $0x120] sm:$0xff]
      %v319 = vld [vmem:[%s253 + $0x128] sm:$0xff]
      %v320 = vld [vmem:[%s253 + $0x130] sm:$0xff]
      %v321 = vld [vmem:[%s253 + $0x138] sm:$0xff]
      %v322 = vld [vmem:[%s253 + $0x140] sm:$0xff]
      %v323 = vld [vmem:[%s253 + $0x148] sm:$0xff]
      %v324 = vld [vmem:[%s253 + $0x150] sm:$0xff]
      %v325 = vld [vmem:[%s253 + $0x158] sm:$0xff]
      %v326 = vld [vmem:[%s253 + $0x160] sm:$0xff]
      %v327 = vld [vmem:[%s253 + $0x168] sm:$0xff]
      %v328 = vld [vmem:[%s253 + $0x170] sm:$0xff]
      %v329 = vld [vmem:[%s253 + $0x178] sm:$0xff]
      %v330 = vld [vmem:[%s253 + $0x180] sm:$0xff]
      %v331 = vld [vmem:[%s253 + $0x188] sm:$0xff]
      %v332 = vld [vmem:[%s253 + $0x190] sm:$0xff]
      %v333 = vld [vmem:[%s253 + $0x198] sm:$0xff]
      %v334 = vld [vmem:[%s253 + $0x1a0] sm:$0xff]
      %v335 = vld [vmem:[%s253 + $0x1a8] sm:$0xff]
      %v336 = vld [vmem:[%s253 + $0x1b0] sm:$0xff]
      %v337 = vld [vmem:[%s253 + $0x1b8] sm:$0xff]
      %v338 = vld [vmem:[%s253 + $0x1c0] sm:$0xff]
      %v339 = vld [vmem:[%s253 + $0x1c8] sm:$0xff]
      %v340 = vld [vmem:[%s253 + $0x1d0] sm:$0xff]
      %v341 = vld [vmem:[%s253 + $0x1d8] sm:$0xff]
      %v342 = vld [vmem:[%s253 + $0x1e0] sm:$0xff]
      %v343 = vld [vmem:[%s253 + $0x1e8] sm:$0xff]
      %v344 = vld [vmem:[%s253 + $0x1f0] sm:$0xff]
      %v345 = vld [vmem:[%s253 + $0x1f8] sm:$0xff]
      %347 = vset.pattern.permute.xlu0 0
      %348 = vperm.xlu0 %347, %v273
      %v349 = vpop.permute.xlu0 %348
      %352 = vset.pattern.permute.xlu0 0
      %353 = vperm.xlu0 %352, %v274
      %v354 = vpop.permute.xlu0 %353
      %357 = vset.pattern.permute.xlu0 0
      %358 = vperm.xlu0 %357, %v275
      %v359 = vpop.permute.xlu0 %358
      %362 = vset.pattern.permute.xlu0 0
      %363 = vperm.xlu0 %362, %v276
      %v364 = vpop.permute.xlu0 %363
      %366 = vmatpush.msra.mxu0 %v312
      %367 = vmatpush.msra.mxu0 %v310
      %368 = vmatpush.msra.mxu0 %v308
      %369 = vmatpush.msra.mxu0 %v306
      %370 = vmatpush.msra.mxu0 %v304
      %371 = vmatpush.msra.mxu0 %v302
      %372 = vmatpush.msra.mxu0 %v300
      %373 = vmatpush.msra.mxu0 %v298
      %374 = vmatpush.msra.mxu0 %v296
      %375 = vmatpush.msra.mxu0 %v294
      %376 = vmatpush.msra.mxu0 %v292
      %377 = vmatpush.msra.mxu0 %v290
      %378 = vmatpush.msra.mxu0 %v288
      %379 = vmatpush.msra.mxu0 %v286
      %380 = vmatpush.msra.mxu0 %v284
      %381 = vmatpush.msra.mxu0 %v282
      %382 = vmatmul.f32.gmra.mxu0 %v265
      %v383 = vpop.f32.mrf.mxu0
      %v384 = vadd.f32 %v349, %v383
      %385 = vmatmul.f32.gmra.mxu0 %v267
      %v386 = vpop.f32.mrf.mxu0
      %v387 = vadd.f32 %v354, %v386
      %388 = vmatmul.f32.gmra.mxu0 %v269
      %v389 = vpop.f32.mrf.mxu0
      %v390 = vadd.f32 %v359, %v389
      %391 = vmatmul.f32.gmra.mxu0 %v271
      %v392 = vpop.f32.mrf.mxu0
      %v393 = vadd.f32 %v364, %v392
      %394 = vdwg.mxu0
      %395 = vmatpush.msra.mxu0 %v344
      %396 = vmatpush.msra.mxu0 %v342
      %397 = vmatpush.msra.mxu0 %v340
      %398 = vmatpush.msra.mxu0 %v338
      %399 = vmatpush.msra.mxu0 %v336
      %400 = vmatpush.msra.mxu0 %v334
      %401 = vmatpush.msra.mxu0 %v332
      %402 = vmatpush.msra.mxu0 %v330
      %403 = vmatpush.msra.mxu0 %v328
      %404 = vmatpush.msra.mxu0 %v326
      %405 = vmatpush.msra.mxu0 %v324
      %406 = vmatpush.msra.mxu0 %v322
      %407 = vmatpush.msra.mxu0 %v320
      %408 = vmatpush.msra.mxu0 %v318
      %409 = vmatpush.msra.mxu0 %v316
      %410 = vmatpush.msra.mxu0 %v314
      %411 = vmatmul.f32.gmra.mxu0 %v266
      %v412 = vpop.f32.mrf.mxu0
      %v413 = vadd.f32 %v384, %v412
      %414 = vmatmul.f32.gmra.mxu0 %v268
      %v415 = vpop.f32.mrf.mxu0
      %v416 = vadd.f32 %v387, %v415
      %417 = vmatmul.f32.gmra.mxu0 %v270
      %v418 = vpop.f32.mrf.mxu0
      %v419 = vadd.f32 %v390, %v418
      %420 = vmatmul.f32.gmra.mxu0 %v272
      %v421 = vpop.f32.mrf.mxu0
      %v422 = vadd.f32 %v393, %v421
      %423 = vdwg.mxu0
      %424 = vmatpush.msra.mxu0 %v313
      %425 = vmatpush.msra.mxu0 %v311
      %426 = vmatpush.msra.mxu0 %v309
      %427 = vmatpush.msra.mxu0 %v307
      %428 = vmatpush.msra.mxu0 %v305
      %429 = vmatpush.msra.mxu0 %v303
      %430 = vmatpush.msra.mxu0 %v301
      %431 = vmatpush.msra.mxu0 %v299
      %432 = vmatpush.msra.mxu0 %v297
      %433 = vmatpush.msra.mxu0 %v295
      %434 = vmatpush.msra.mxu0 %v293
      %435 = vmatpush.msra.mxu0 %v291
      %436 = vmatpush.msra.mxu0 %v289
      %437 = vmatpush.msra.mxu0 %v287
      %438 = vmatpush.msra.mxu0 %v285
      %439 = vmatpush.msra.mxu0 %v283
      %440 = vmatmul.f32.gmra.mxu0 %v265
      %v441 = vpop.f32.mrf.mxu0
      %v442 = vadd.f32 %v349, %v441
      %443 = vmatmul.f32.gmra.mxu0 %v267
      %v444 = vpop.f32.mrf.mxu0
      %v445 = vadd.f32 %v354, %v444
      %446 = vmatmul.f32.gmra.mxu0 %v269
      %v447 = vpop.f32.mrf.mxu0
      %v448 = vadd.f32 %v359, %v447
      %449 = vmatmul.f32.gmra.mxu0 %v271
      %v450 = vpop.f32.mrf.mxu0
      %v451 = vadd.f32 %v364, %v450
      %452 = vdwg.mxu0
      %453 = vmatpush.msra.mxu0 %v345
      %454 = vmatpush.msra.mxu0 %v343
      %455 = vmatpush.msra.mxu0 %v341
      %456 = vmatpush.msra.mxu0 %v339
      %457 = vmatpush.msra.mxu0 %v337
      %458 = vmatpush.msra.mxu0 %v335
      %459 = vmatpush.msra.mxu0 %v333
      %460 = vmatpush.msra.mxu0 %v331
      %461 = vmatpush.msra.mxu0 %v329
      %462 = vmatpush.msra.mxu0 %v327
      %463 = vmatpush.msra.mxu0 %v325
      %464 = vmatpush.msra.mxu0 %v323
      %465 = vmatpush.msra.mxu0 %v321
      %466 = vmatpush.msra.mxu0 %v319
      %467 = vmatpush.msra.mxu0 %v317
      %468 = vmatpush.msra.mxu0 %v315
      %469 = vmatmul.f32.gmra.mxu0 %v266
      %v470 = vpop.f32.mrf.mxu0
      %v471 = vadd.f32 %v442, %v470
      %472 = vmatmul.f32.gmra.mxu0 %v268
      %v473 = vpop.f32.mrf.mxu0
      %v474 = vadd.f32 %v445, %v473
      %475 = vmatmul.f32.gmra.mxu0 %v270
      %v476 = vpop.f32.mrf.mxu0
      %v477 = vadd.f32 %v448, %v476
      %478 = vmatmul.f32.gmra.mxu0 %v272
      %v479 = vpop.f32.mrf.mxu0
      %v480 = vadd.f32 %v451, %v479
      %481 = vdwg.mxu0
      %v482 = vmax.f32 %v413, 0.0
      %v483 = vmax.f32 %v471, 0.0
      %v484 = vmax.f32 %v416, 0.0
      %v485 = vmax.f32 %v474, 0.0
      %v486 = vmax.f32 %v419, 0.0
      %v487 = vmax.f32 %v477, 0.0
      %v488 = vmax.f32 %v422, 0.0
      %v489 = vmax.f32 %v480, 0.0
      %491 = vset.pattern.permute.xlu0 0
      %492 = vperm.xlu0 %491, %v277
      %v493 = vpop.permute.xlu0 %492
      %496 = vset.pattern.permute.xlu0 0
      %497 = vperm.xlu0 %496, %v278
      %v498 = vpop.permute.xlu0 %497
      %501 = vset.pattern.permute.xlu0 0
      %502 = vperm.xlu0 %501, %v279
      %v503 = vpop.permute.xlu0 %502
      %506 = vset.pattern.permute.xlu0 0
      %507 = vperm.xlu0 %506, %v280
      %v508 = vpop.permute.xlu0 %507
      %v510 = vmul.f32 %v482, %v493
      %v511 = vmul.f32 %v483, %v493
      %v512 = vmul.f32 %v484, %v498
      %v513 = vmul.f32 %v485, %v498
      %v514 = vmul.f32 %v486, %v503
      %v515 = vmul.f32 %v487, %v503
      %v516 = vmul.f32 %v488, %v508
      %v517 = vmul.f32 %v489, %v508
      %v518 = vadd.f32 %v510, %v512
      %v519 = vadd.f32 %v518, %v514
      %v520 = vadd.f32 %v519, %v516
      %v521 = vrot.slane %v520, 4
      %v522 = vadd.f32 %v520, %v521
      %v523 = vrot.slane %v522, 2
      %v524 = vadd.f32 %v522, %v523
      %v525 = vrot.slane %v524, 1
      %v526 = vadd.f32 %v524, %v525
      %v527 = vadd.f32 %v511, %v513
      %v528 = vadd.f32 %v527, %v515
      %v529 = vadd.f32 %v528, %v517
      %v530 = vrot.slane %v529, 4
      %v531 = vadd.f32 %v529, %v530
      %v532 = vrot.slane %v531, 2
      %v533 = vadd.f32 %v531, %v532
      %v534 = vrot.slane %v533, 1
      %v535 = vadd.f32 %v533, %v534
      %v536 = vstv %s281
      %v537 = vadd.f32 %v526, %v536
      %v538 = vadd.f32 %v535, %v536
      %v539 = vxor.u32 %v537, 2147483648
      %v540 = vxor.u32 %v538, 2147483648
      %v541 = vmul.f32 %v539, 1.442695
      %v542 = vpow.pop %v541
      %v543 = vmul.f32 %v540, 1.442695
      %v544 = vpow.pop %v543
      %v545 = vadd.f32 %v542, 1.0
      %v546 = vadd.f32 %v544, 1.0
      %v547 = vrcp.pop %v545
      %v548 = vmul.f32 %v545, %v547
      %v549 = vsub.f32 1.0, %v548
      %v550 = vmul.f32 %v547, %v549
      %v551 = vadd.f32 %v547, %v550
      %vm552 = vweird.f32 %v545
      %vm553 = vweird.f32 %v547
      %vm554 = vmor %vm552, %vm553
      %v555 = vsel %vm554, %v547, %v551
      %v556 = vand.u32 2147483647, %v545
      %vm557 = vcmp.eq.f32.partialorder %v556, 8.507059e+37
      %v558 = vand.u32 %v545, 2147483648
      %v559 = vor.u32 1.1754944e-38, %v558
      %v560 = vsel %vm557, %v559, %v555
      %v561 = vmul.f32 1.0, %v560
      %v562 = vrcp.pop %v546
      %v563 = vmul.f32 %v546, %v562
      %v564 = vsub.f32 1.0, %v563
      %v565 = vmul.f32 %v562, %v564
      %v566 = vadd.f32 %v562, %v565
      %vm567 = vweird.f32 %v546
      %vm568 = vweird.f32 %v562
      %vm569 = vmor %vm567, %vm568
      %v570 = vsel %vm569, %v562, %v566
      %v571 = vand.u32 2147483647, %v546
      %vm572 = vcmp.eq.f32.partialorder %v571, 8.507059e+37
      %v573 = vand.u32 %v546, 2147483648
      %v574 = vor.u32 1.1754944e-38, %v573
      %v575 = vsel %vm572, %v574, %v570
      %v576 = vmul.f32 1.0, %v575
      %v577 = vmul.f32 %v282, %v561
      %v578 = vmul.f32 %v283, %v576
      %v579 = vmul.f32 %v284, %v561
      %v580 = vmul.f32 %v285, %v576
      %v581 = vmul.f32 %v286, %v561
      %v582 = vmul.f32 %v287, %v576
      %v583 = vmul.f32 %v288, %v561
      %v584 = vmul.f32 %v289, %v576
      %v585 = vmul.f32 %v290, %v561
      %v586 = vmul.f32 %v291, %v576
      %v587 = vmul.f32 %v292, %v561
      %v588 = vmul.f32 %v293, %v576
      %v589 = vmul.f32 %v294, %v561
      %v590 = vmul.f32 %v295, %v576
      %v591 = vmul.f32 %v296, %v561
      %v592 = vmul.f32 %v297, %v576
      %v593 = vmul.f32 %v298, %v561
      %v594 = vmul.f32 %v299, %v576
      %v595 = vmul.f32 %v300, %v561
      %v596 = vmul.f32 %v301, %v576
      %v597 = vmul.f32 %v302, %v561
      %v598 = vmul.f32 %v303, %v576
      %v599 = vmul.f32 %v304, %v561
      %v600 = vmul.f32 %v305, %v576
      %v601 = vmul.f32 %v306, %v561
      %v602 = vmul.f32 %v307, %v576
      %v603 = vmul.f32 %v308, %v561
      %v604 = vmul.f32 %v309, %v576
      %v605 = vmul.f32 %v310, %v561
      %v606 = vmul.f32 %v311, %v576
      %v607 = vmul.f32 %v312, %v561
      %v608 = vmul.f32 %v313, %v576
      %v609 = vmul.f32 %v314, %v561
      %v610 = vmul.f32 %v315, %v576
      %v611 = vmul.f32 %v316, %v561
      %v612 = vmul.f32 %v317, %v576
      %v613 = vmul.f32 %v318, %v561
      %v614 = vmul.f32 %v319, %v576
      %v615 = vmul.f32 %v320, %v561
      %v616 = vmul.f32 %v321, %v576
      %v617 = vmul.f32 %v322, %v561
      %v618 = vmul.f32 %v323, %v576
      %v619 = vmul.f32 %v324, %v561
      %v620 = vmul.f32 %v325, %v576
      %v621 = vmul.f32 %v326, %v561
      %v622 = vmul.f32 %v327, %v576
      %v623 = vmul.f32 %v328, %v561
      %v624 = vmul.f32 %v329, %v576
      %v625 = vmul.f32 %v330, %v561
      %v626 = vmul.f32 %v331, %v576
      %v627 = vmul.f32 %v332, %v561
      %v628 = vmul.f32 %v333, %v576
      %v629 = vmul.f32 %v334, %v561
      %v630 = vmul.f32 %v335, %v576
      %v631 = vmul.f32 %v336, %v561
      %v632 = vmul.f32 %v337, %v576
      %v633 = vmul.f32 %v338, %v561
      %v634 = vmul.f32 %v339, %v576
      %v635 = vmul.f32 %v340, %v561
      %v636 = vmul.f32 %v341, %v576
      %v637 = vmul.f32 %v342, %v561
      %v638 = vmul.f32 %v343, %v576
      %v639 = vmul.f32 %v344, %v561
      %v640 = vmul.f32 %v345, %v576
      %641 = vst [vmem:[%s263] sm:$0xff] %v577
      %642 = vst [vmem:[%s263 + $0x8] sm:$0xff] %v578
      %643 = vst [vmem:[%s263 + $0x10] sm:$0xff] %v579
      %644 = vst [vmem:[%s263 + $0x18] sm:$0xff] %v580
      %645 = vst [vmem:[%s263 + $0x20] sm:$0xff] %v581
      %646 = vst [vmem:[%s263 + $0x28] sm:$0xff] %v582
      %647 = vst [vmem:[%s263 + $0x30] sm:$0xff] %v583
      %648 = vst [vmem:[%s263 + $0x38] sm:$0xff] %v584
      %649 = vst [vmem:[%s263 + $0x40] sm:$0xff] %v585
      %650 = vst [vmem:[%s263 + $0x48] sm:$0xff] %v586
      %651 = vst [vmem:[%s263 + $0x50] sm:$0xff] %v587
      %652 = vst [vmem:[%s263 + $0x58] sm:$0xff] %v588
      %653 = vst [vmem:[%s263 + $0x60] sm:$0xff] %v589
      %654 = vst [vmem:[%s263 + $0x68] sm:$0xff] %v590
      %655 = vst [vmem:[%s263 + $0x70] sm:$0xff] %v591
      %656 = vst [vmem:[%s263 + $0x78] sm:$0xff] %v592
      %657 = vst [vmem:[%s263 + $0x80] sm:$0xff] %v593
      %658 = vst [vmem:[%s263 + $0x88] sm:$0xff] %v594
      %659 = vst [vmem:[%s263 + $0x90] sm:$0xff] %v595
      %660 = vst [vmem:[%s263 + $0x98] sm:$0xff] %v596
      %661 = vst [vmem:[%s263 + $0xa0] sm:$0xff] %v597
      %662 = vst [vmem:[%s263 + $0xa8] sm:$0xff] %v598
      %663 = vst [vmem:[%s263 + $0xb0] sm:$0xff] %v599
      %664 = vst [vmem:[%s263 + $0xb8] sm:$0xff] %v600
      %665 = vst [vmem:[%s263 + $0xc0] sm:$0xff] %v601
      %666 = vst [vmem:[%s263 + $0xc8] sm:$0xff] %v602
      %667 = vst [vmem:[%s263 + $0xd0] sm:$0xff] %v603
      %668 = vst [vmem:[%s263 + $0xd8] sm:$0xff] %v604
      %669 = vst [vmem:[%s263 + $0xe0] sm:$0xff] %v605
      %670 = vst [vmem:[%s263 + $0xe8] sm:$0xff] %v606
      %671 = vst [vmem:[%s263 + $0xf0] sm:$0xff] %v607
      %672 = vst [vmem:[%s263 + $0xf8] sm:$0xff] %v608
      %673 = vst [vmem:[%s263 + $0x100] sm:$0xff] %v609
      %674 = vst [vmem:[%s263 + $0x108] sm:$0xff] %v610
      %675 = vst [vmem:[%s263 + $0x110] sm:$0xff] %v611
      %676 = vst [vmem:[%s263 + $0x118] sm:$0xff] %v612
      %677 = vst [vmem:[%s263 + $0x120] sm:$0xff] %v613
      %678 = vst [vmem:[%s263 + $0x128] sm:$0xff] %v614
      %679 = vst [vmem:[%s263 + $0x130] sm:$0xff] %v615
      %680 = vst [vmem:[%s263 + $0x138] sm:$0xff] %v616
      %681 = vst [vmem:[%s263 + $0x140] sm:$0xff] %v617
      %682 = vst [vmem:[%s263 + $0x148] sm:$0xff] %v618
      %683 = vst [vmem:[%s263 + $0x150] sm:$0xff] %v619
      %684 = vst [vmem:[%s263 + $0x158] sm:$0xff] %v620
      %685 = vst [vmem:[%s263 + $0x160] sm:$0xff] %v621
      %686 = vst [vmem:[%s263 + $0x168] sm:$0xff] %v622
      %687 = vst [vmem:[%s263 + $0x170] sm:$0xff] %v623
      %688 = vst [vmem:[%s263 + $0x178] sm:$0xff] %v624
      %689 = vst [vmem:[%s263 + $0x180] sm:$0xff] %v625
      %690 = vst [vmem:[%s263 + $0x188] sm:$0xff] %v626
      %691 = vst [vmem:[%s263 + $0x190] sm:$0xff] %v627
      %692 = vst [vmem:[%s263 + $0x198] sm:$0xff] %v628
      %693 = vst [vmem:[%s263 + $0x1a0] sm:$0xff] %v629
      %694 = vst [vmem:[%s263 + $0x1a8] sm:$0xff] %v630
      %695 = vst [vmem:[%s263 + $0x1b0] sm:$0xff] %v631
      %696 = vst [vmem:[%s263 + $0x1b8] sm:$0xff] %v632
      %697 = vst [vmem:[%s263 + $0x1c0] sm:$0xff] %v633
      %698 = vst [vmem:[%s263 + $0x1c8] sm:$0xff] %v634
      %699 = vst [vmem:[%s263 + $0x1d0] sm:$0xff] %v635
      %700 = vst [vmem:[%s263 + $0x1d8] sm:$0xff] %v636
      %701 = vst [vmem:[%s263 + $0x1e0] sm:$0xff] %v637
      %702 = vst [vmem:[%s263 + $0x1e8] sm:$0xff] %v638
      %703 = vst [vmem:[%s263 + $0x1f0] sm:$0xff] %v639
      %704 = vst [vmem:[%s263 + $0x1f8] sm:$0xff] %v640
      %s705 = smul.u32 2, %s22
      %p706 = scmp.lt.s32.totalorder %s21, 1
      %s707 = scalar_select %p706, %s21, 1
      %p708 = scmp.lt.s32.totalorder %s705, 1
      %s709 = scalar_select %p708, %s705, 1
      %s710 = smul.addr %s707, 64
      %s711 = sadd.s32 %s709, %s710
      %s712 = smul.addr %s711, 8
      %s713 = scalar_lea.vmem %s5, %s712
      // Predicated region
      $region41: #{pa_layer.1} parent=39 // pred_check
        %p714 = pneg %p161
      $region42: #{pa_layer.1} parent=39 // pred_check_branch
        %716 = sbr.rel (%p714) target = $region44
      $region43: #{pa_layer.1} parent=39 // pred_region
        %s717 = smul.u32 2, %s22
      $region44: #{pa_layer.1} parent=39 // pred_fallthru
        _
    $region40: #{pa_layer.1} parent=5 // pred_fallthru
      _
    %p718 = scmp.le.s32.totalorder 2, %s12
    // Predicated region
    $region45: #{pa_layer.1} parent=5 // pred_check
      %p719 = pneg %p718
    $region46: #{pa_layer.1} parent=5 // pred_check_branch
      %721 = sbr.rel (%p719) target = $region48
    $region47: #{pa_layer.1} parent=5 // pred_region
      %s722 = ssub.s32 %s12, 2
      // Predicated region
      $region49: #{pa_layer.1} parent=47 // pred_check
        %p723 = pneg %p167
      $region50: #{pa_layer.1} parent=47 // pred_check_branch
        %725 = sbr.rel (%p723) target = $region52
      $region51: #{pa_layer.1} parent=47 // pred_region
        %s726 = smul.u32 2, %s24
        %p727 = scmp.lt.s32.totalorder %s23, 1
        %s728 = scalar_select %p727, %s23, 1
        %p729 = scmp.lt.s32.totalorder %s726, 1
        %s730 = scalar_select %p729, %s726, 1
        %s731 = smul.addr %s728, 64
        %s732 = sadd.s32 %s730, %s731
        %s733 = smul.addr %s732, 8
        %s734 = scalar_lea.vmem %s5, %s733
      $region52: #{pa_layer.1} parent=47 // pred_fallthru
        _
    $region48: #{pa_layer.1} parent=5 // pred_fallthru
      _
  $region6: #{pa_layer.1} parent=0 // loop_footer
    %s16 = sadd.s32 1, %s12
  $region7: #{pa_layer.1} parent=0 // loop_footer_branch
    %11 = sbr.rel target = $region3
  $region8: #{pa_layer.1} parent=0 // loop_exit
    _

</llo_original>
